<compile_context>
chip_gen: v6e
topology: v6e:2x2x1
jax: 0.10.0
libtpu: 0.0.40
codegen_flags: <defaults>
</compile_context>

<pallas_src>
import functools

import jax
import jax.numpy as jnp
import numpy as np
from jax import lax
from jax.experimental import pallas as pl
from jax.experimental.pallas import tpu as pltpu


def _round_up(x, m):
    return (x + m - 1) // m * m


def selfattn_kernel(x_ref, wqkv_ref, bqkv_ref, gamma_ref, o_ref, *, cqp):
    # Hoisted once per grid step (shared across the Bt folded batches).
    w_bf = wqkv_ref[...].astype(jnp.bfloat16)          # (Ctot, C)
    b = bqkv_ref[...]                                  # (Ctot, 1) f32
    gamma = gamma_ref[0]

    for bt in range(x_ref.shape[0]):                   # static unroll over batch tile
        x = x_ref[bt]                                  # (C, N) f32

        # Fused QKV projection: one well-filled MXU matmul (M = 2*Cqp + C rows)
        # instead of three tiny (4/4/32-row) ones.
        qkv = jnp.dot(w_bf, x.astype(jnp.bfloat16),
                      preferred_element_type=jnp.float32) + b        # (Ctot, N)

        q = qkv[0:cqp].astype(jnp.bfloat16)            # (Cqp, N), zero-padded rows
        k = qkv[cqp:2 * cqp].astype(jnp.bfloat16)      # (Cqp, N)
        v = qkv[2 * cqp:].astype(jnp.bfloat16)         # (C,   N)

        # energy[i, j] = sum_c q[c, i] * k[c, j] -- contract the channel axis
        # directly (no q.T materialization).  Padded rows are 0 in both q and k.
        energy = lax.dot_general(
            q, k, dimension_numbers=(((0,), (0,)), ((), ())),
            preferred_element_type=jnp.float32)                      # (N, N)

        # Row softmax over j, numerically stabilized, f32 math.
        energy = energy - jnp.max(energy, axis=-1, keepdims=True)
        p = jnp.exp(energy)
        attn = p * pl.reciprocal(jnp.sum(p, axis=-1, keepdims=True), approx=True)

        # out[c, i] = sum_j v[c, j] * attn[i, j] -- contract j on both operands
        # (no attn.T materialization).
        out = lax.dot_general(
            v, attn.astype(jnp.bfloat16),
            dimension_numbers=(((1,), (1,)), ((), ())),
            preferred_element_type=jnp.float32)                      # (C, N)

        o_ref[bt] = gamma * out + x


def self_attn(x, wq, bq, wk, bk, wv, bv, gamma, *, batch_tile=None):
    """x: (B, C, H, W) float32. Returns (B, C, H, W)."""
    B, C, H, W = x.shape
    N = H * W
    Cq = wq.shape[0]
    Cqp = _round_up(Cq, 8)             # sublane-aligned q/k slots in the stack
    Ctot = 2 * Cqp + C

    # Stack (and zero-pad) the three 1x1-conv weights/biases into one projection.
    wqkv = jnp.zeros((Ctot, C), jnp.float32)
    wqkv = wqkv.at[0:Cq].set(wq.astype(jnp.float32))
    wqkv = wqkv.at[Cqp:Cqp + Cq].set(wk.astype(jnp.float32))
    wqkv = wqkv.at[2 * Cqp:2 * Cqp + C].set(wv.astype(jnp.float32))
    bqkv = jnp.zeros((Ctot, 1), jnp.float32)
    bqkv = bqkv.at[0:Cq, 0].set(bq.astype(jnp.float32))
    bqkv = bqkv.at[Cqp:Cqp + Cq, 0].set(bk.astype(jnp.float32))
    bqkv = bqkv.at[2 * Cqp:2 * Cqp + C, 0].set(bv.astype(jnp.float32))

    if batch_tile is None:
        # Fold batches per grid step to amortize per-step overhead (v5e/v6e),
        # but keep >= 2 grid steps so both v7x TensorCores get work, and cap
        # the per-step working set comfortably inside scoped VMEM.
        batch_tile = max(1, B // 2)
        per_batch_bytes = 4 * (2 * N * N + 2 * Ctot * N + 3 * C * N)
        vmem_budget = 8 * 1024 * 1024
        batch_tile = max(1, min(batch_tile, vmem_budget // max(per_batch_bytes, 1)))
    while B % batch_tile:
        batch_tile -= 1

    x_flat = x.reshape(B, C, N).astype(jnp.float32)
    gamma1 = gamma.reshape(1).astype(jnp.float32)

    kernel = functools.partial(selfattn_kernel, cqp=Cqp)

    out_flat = pl.pallas_call(
        kernel,
        out_shape=jax.ShapeDtypeStruct((B, C, N), jnp.float32),
        grid_spec=pltpu.PrefetchScalarGridSpec(
            num_scalar_prefetch=0,
            grid=(B // batch_tile,),
            in_specs=[
                pl.BlockSpec((batch_tile, C, N), lambda b: (b, 0, 0)),  # x block
                pl.BlockSpec((Ctot, C), lambda b: (0, 0)),              # stacked W
                pl.BlockSpec((Ctot, 1), lambda b: (0, 0)),              # stacked bias
                pl.BlockSpec(memory_space=pltpu.SMEM),                  # gamma scalar
            ],
            out_specs=pl.BlockSpec((batch_tile, C, N), lambda b: (b, 0, 0)),
        ),
        compiler_params=pltpu.CompilerParams(
            dimension_semantics=("parallel",)),
    )(x_flat, wqkv, bqkv, gamma1)

    return out_flat.reshape(B, C, H, W)


def self_attn_ref(x, wq, bq, wk, bk, wv, bv, gamma):
    """Pure-JAX (f32) reference mirroring the PyTorch forward."""
    B, C, H, W = x.shape
    N = H * W
    xf = x.reshape(B, C, N)
    q = jnp.einsum('oc,bcn->bon', wq, xf) + bq[None, :, None]   # (B, Cq, N)
    k = jnp.einsum('oc,bcn->bon', wk, xf) + bk[None, :, None]   # (B, Cq, N)
    v = jnp.einsum('oc,bcn->bon', wv, xf) + bv[None, :, None]   # (B, C,  N)
    energy = jnp.einsum('bci,bcj->bij', q, k)                   # (B, N, N)
    attn = jax.nn.softmax(energy, axis=-1)
    out = jnp.einsum('bcj,bij->bci', v, attn)                   # (B, C, N)
    return gamma * out.reshape(B, C, H, W) + x


if __name__ == "__main__":
    # in_dim=32 -> query/key channels = 32 // 8 = 4; spatial 16x16 -> N=256
    # (multiple of 128 -> lane-dense tiles and unmasked stores).
    B, C, H, W = 2, 32, 16, 16
    Cq = C // 8

    key = jax.random.PRNGKey(0)
    k_x, k_wq, k_bq, k_wk, k_bk, k_wv, k_bv = jax.random.split(key, 7)

    x = jax.random.normal(k_x, (B, C, H, W), dtype=jnp.float32)
    wq = jax.random.normal(k_wq, (Cq, C), dtype=jnp.float32) * 0.1
    bq = jax.random.normal(k_bq, (Cq,), dtype=jnp.float32) * 0.1
    wk = jax.random.normal(k_wk, (Cq, C), dtype=jnp.float32) * 0.1
    bk = jax.random.normal(k_bk, (Cq,), dtype=jnp.float32) * 0.1
    wv = jax.random.normal(k_wv, (C, C), dtype=jnp.float32) * 0.1
    bv = jax.random.normal(k_bv, (C,), dtype=jnp.float32) * 0.1
    # nn.Parameter(torch.zeros(1)) would make the output trivially equal to x;
    # use a nonzero deterministic gamma so the attention path is exercised.
    gamma = jnp.array([0.5], dtype=jnp.float32)

    y = jax.block_until_ready(self_attn(x, wq, bq, wk, bk, wv, bv, gamma))
    y_ref = self_attn_ref(x, wq, bq, wk, bk, wv, bv, gamma)

    # bf16 MXU operands with f32 accumulation: tolerance covers bf16 rounding.
    np.testing.assert_allclose(np.asarray(y), np.asarray(y_ref),
                               rtol=1e-2, atol=2e-2)

    print("KERNEL_OK")
</pallas_src>

<mosaic_0001>
module attributes {stable_mosaic.version = 11 : i64} {
  func.func @selfattn_kernel(%arg0: i32, %arg1: memref<1x32x256xf32, #tpu.memory_space<vmem>>, %arg2: memref<48x32xf32, #tpu.memory_space<vmem>>, %arg3: memref<48x1xf32, #tpu.memory_space<vmem>>, %arg4: memref<1xf32, #tpu.memory_space<smem>>, %arg5: memref<1x32x256xf32, #tpu.memory_space<vmem>>) attributes {dimension_semantics = [#tpu.dimension_semantics<parallel>], iteration_bounds = array<i64: 2>, scalar_prefetch = 0 : i64, scratch_operands = 0 : i64, tpu.core_type = #tpu.core_type<tc>, window_params = [{transform_indices = @transform_0, window_bounds = array<i64: 1, 32, 256>}, {pipeline_mode = #tpu.pipeline_mode<synchronous>, transform_indices = @transform_1, window_bounds = array<i64: 48, 32>}, {pipeline_mode = #tpu.pipeline_mode<synchronous>, transform_indices = @transform_2, window_bounds = array<i64: 48, 1>}, {transform_indices = @transform_3, window_bounds = array<i64: 1>}, {transform_indices = @transform_4, window_bounds = array<i64: 1, 32, 256>}]} {
    %c0 = arith.constant 0 : index
    %c0_0 = arith.constant 0 : index
    %0 = vector.load %arg2[%c0, %c0_0] : memref<48x32xf32, #tpu.memory_space<vmem>>, vector<48x32xf32>
    %1 = arith.truncf %0 : vector<48x32xf32> to vector<48x32xbf16>
    %c0_1 = arith.constant 0 : index
    %c0_2 = arith.constant 0 : index
    %2 = vector.load %arg3[%c0_1, %c0_2] : memref<48x1xf32, #tpu.memory_space<vmem>>, vector<48x1xf32>
    %c0_3 = arith.constant 0 : index
    %3 = memref.load %arg4[%c0_3] : memref<1xf32, #tpu.memory_space<smem>>
    %c0_4 = arith.constant 0 : index
    %c0_5 = arith.constant 0 : index
    %c0_6 = arith.constant 0 : index
    %4 = vector.load %arg1[%c0_4, %c0_5, %c0_6] : memref<1x32x256xf32, #tpu.memory_space<vmem>>, vector<1x32x256xf32>
    %5 = vector.shape_cast %4 : vector<1x32x256xf32> to vector<32x256xf32>
    %6 = arith.truncf %5 : vector<32x256xf32> to vector<32x256xbf16>
    %cst = arith.constant dense<0.000000e+00> : vector<48x256xf32>
    %7 = tpu.matmul %1, %6, %cst {dimension_numbers = #tpu.dot_dimension_numbers<[1], [0], [0], [1], [0, 0, 1, 1], [], []>} : vector<48x32xbf16>, vector<32x256xbf16>, vector<48x256xf32> -> vector<48x256xf32>
    %8 = vector.broadcast %2 : vector<48x1xf32> to vector<48x256xf32>
    %9 = arith.addf %7, %8 : vector<48x256xf32>
    %10 = vector.extract_strided_slice %9 {offsets = [0, 0], sizes = [8, 256], strides = [1, 1]} : vector<48x256xf32> to vector<8x256xf32>
    %11 = arith.truncf %10 : vector<8x256xf32> to vector<8x256xbf16>
    %12 = vector.extract_strided_slice %9 {offsets = [8, 0], sizes = [8, 256], strides = [1, 1]} : vector<48x256xf32> to vector<8x256xf32>
    %13 = arith.truncf %12 : vector<8x256xf32> to vector<8x256xbf16>
    %14 = vector.extract_strided_slice %9 {offsets = [16, 0], sizes = [32, 256], strides = [1, 1]} : vector<48x256xf32> to vector<32x256xf32>
    %15 = arith.truncf %14 : vector<32x256xf32> to vector<32x256xbf16>
    %cst_7 = arith.constant dense<0.000000e+00> : vector<256x256xf32>
    %16 = tpu.matmul %11, %13, %cst_7 {dimension_numbers = #tpu.dot_dimension_numbers<[0], [0], [1], [1], [0, 1, 1, 1], [], []>} : vector<8x256xbf16>, vector<8x256xbf16>, vector<256x256xf32> -> vector<256x256xf32>
    %cst_8 = arith.constant dense<0xFF800000> : vector<256xf32>
    %17 = vector.multi_reduction <maximumf>, %16, %cst_8 [1] : vector<256x256xf32> to vector<256xf32>
    %18 = vector.shape_cast %17 : vector<256xf32> to vector<256x1xf32>
    %19 = vector.broadcast %18 : vector<256x1xf32> to vector<256x256xf32>
    %20 = arith.subf %16, %19 : vector<256x256xf32>
    %21 = math.exp %20 : vector<256x256xf32>
    %cst_9 = arith.constant dense<0.000000e+00> : vector<256xf32>
    %22 = vector.multi_reduction <add>, %21, %cst_9 [1] : vector<256x256xf32> to vector<256xf32>
    %23 = vector.shape_cast %22 : vector<256xf32> to vector<256x1xf32>
    %24 = tpu.reciprocal %23 {approx = true} : vector<256x1xf32> -> vector<256x1xf32>
    %25 = vector.broadcast %24 : vector<256x1xf32> to vector<256x256xf32>
    %26 = arith.mulf %21, %25 : vector<256x256xf32>
    %27 = arith.truncf %26 : vector<256x256xf32> to vector<256x256xbf16>
    %cst_10 = arith.constant dense<0.000000e+00> : vector<32x256xf32>
    %28 = tpu.matmul %15, %27, %cst_10 {dimension_numbers = #tpu.dot_dimension_numbers<[1], [1], [0], [0], [0, 0, 1, 0], [], []>} : vector<32x256xbf16>, vector<256x256xbf16>, vector<32x256xf32> -> vector<32x256xf32>
    %29 = vector.broadcast %3 : f32 to vector<32x256xf32>
    %30 = arith.mulf %29, %28 : vector<32x256xf32>
    %31 = arith.addf %30, %5 : vector<32x256xf32>
    %c0_11 = arith.constant 0 : index
    %c0_12 = arith.constant 0 : index
    %c0_13 = arith.constant 0 : index
    %32 = vector.load %arg5[%c0_11, %c0_12, %c0_13] : memref<1x32x256xf32, #tpu.memory_space<vmem>>, vector<1x32x256xf32>
    %33 = vector.shape_cast %32 : vector<1x32x256xf32> to vector<32x256xf32>
    %34 = vector.shape_cast %31 : vector<32x256xf32> to vector<1x32x256xf32>
    tpu.vector_store %arg5[%c0_11, %c0_12, %c0_13], %34 {strides = array<i32>} : memref<1x32x256xf32, #tpu.memory_space<vmem>>, vector<1x32x256xf32>,
    return
  }
  func.func @transform_0(%arg0: i32) -> (i32, i32, i32) {
    %c0_i32 = arith.constant 0 : i32
    %c0_i32_0 = arith.constant 0 : i32
    %c0_i32_1 = arith.constant 0 : i32
    return %arg0, %c0_i32, %c0_i32_0 : i32, i32, i32
  }
  func.func @transform_1(%arg0: i32) -> (i32, i32) {
    %c0_i32 = arith.constant 0 : i32
    %c0_i32_0 = arith.constant 0 : i32
    %c0_i32_1 = arith.constant 0 : i32
    return %c0_i32, %c0_i32_0 : i32, i32
  }
  func.func @transform_2(%arg0: i32) -> (i32, i32) {
    %c0_i32 = arith.constant 0 : i32
    %c0_i32_0 = arith.constant 0 : i32
    %c0_i32_1 = arith.constant 0 : i32
    return %c0_i32, %c0_i32_0 : i32, i32
  }
  func.func @transform_3(%arg0: i32) -> i32 {
    %c0_i32 = arith.constant 0 : i32
    %c0_i32_0 = arith.constant 0 : i32
    return %c0_i32 : i32
  }
  func.func @transform_4(%arg0: i32) -> (i32, i32, i32) {
    %c0_i32 = arith.constant 0 : i32
    %c0_i32_0 = arith.constant 0 : i32
    %c0_i32_1 = arith.constant 0 : i32
    return %arg0, %c0_i32, %c0_i32_0 : i32, i32, i32
  }
}

</mosaic_0001>

<llo_original>
// kernel: tpu_custom_call.1
$region0: #{tpu_custom_call.1}
  #allocation0 [shape = 'u32[]', space=smem, size = 0x4, offset = 0x4, fixed_abs, tag = 'smem constant byte address 0x4 - core index']
  #allocation1 [shape = 'u32[144,128]{1,0:T(1,128)}', space=vmem, size = 0x12000, scoped, tag = 'internal scratch']
  #allocation2 [shape = 'f32[1]{0:T(128)S(6)}', space=smem, size = 0x200, scoped, tag = 'scoped memory for tpu_custom_call.1']
  %s0 = inlined_call_operand.vmem [shape: f32[2,32,256], index: 0, kind: input, shape index: {}]
  %s1 = inlined_call_operand.vmem [shape: f32[48,32], index: 1, kind: input, shape index: {}]
  %s2 = inlined_call_operand.vmem [shape: f32[48,1], index: 2, kind: input, shape index: {}]
  %s3 = inlined_call_operand.<no memory space> [shape: f32[1], index: 3, kind: input, shape index: {}]
  %s4 = inlined_call_operand.hbm [shape: f32[2,32,256], index: 4, kind: output, shape index: {}]
  %s5 = sld [smem:[#allocation0]]
  $region49: #{tpu_custom_call.1} parent=0
    _
  %s7 = ssub.s32 1, %s5
  %s8 = scalar_select 0, %s7, %s5
  %9 = sst [smem:[#allocation2]] %s3
  $region1: #{tpu_custom_call.1} parent=0
    #allocation3 [shape = 'u8[65536]{0}', space=vmem, size = 0x10000, scoped, tag = 'output window, operand 0']
    #allocation4 [shape = 's32[2]{0}', space=sflag, size = 0x8, scoped, tag = 'scoped memory for tpu_custom_call.1']
    %10 = vsyncpa [#allocation4], 0
    %s11 = scalar_lea.sflag [#allocation4], 1
    %12 = vsyncpa %s11, 0
    loop: start=0, step=1, limit=4
    $region2: #{tpu_custom_call.1} parent=1 // loop_pre_header
      _
    $region3: #{tpu_custom_call.1} parent=1 // loop_header
      %s14 = sphi 0, %s18
      %p15 = scmp.ge.s32.totalorder %s14, 4
      %s24 = sphi 0, %s26
      %s27 = sphi 0, %s24
      %s28 = sphi 0, %s27
      %s44 = sphi 0, %s28
      %s48 = sphi 0, %s48
      %s50 = sphi 0, %s48
      %s51 = sphi 0, %s50
      %s65 = sphi 0, %s51
      %s69 = sphi 0, %s69
      %s71 = sphi 0, %s69
      %s72 = sphi 0, %s71
      %s86 = sphi 0, %s72
      %s90 = sphi 0, %s90
      %s92 = sphi 0, %s90
      %s93 = sphi 0, %s92
      %s107 = sphi 0, %s93
      %s113 = sphi 0, %s115
      %s116 = sphi 0, %s113
      %s117 = sphi 0, %s116
      %s133 = sphi 0, %s117
    $region4: #{tpu_custom_call.1} parent=1 // loop_header_branch
      %17 = sbr.rel (%p15) target = $region8
    $region5: #{tpu_custom_call.1} parent=1 // loop_body
      %s19 = ssub.s32 %s14, 1
      %s20 = ssub.s32 %s14, 2
      %s21 = sadd.s32 %s14, 1
      %s22 = ssub.s32 %s14, %s21
      %p23 = scmp.eq.s32.totalorder %s22, 0
      %s25 = sadd.s32 %s24, 1
      %s26 = scalar_select %p23, %s24, %s25
      %p29 = pneg %p23
      %p30 = scmp.eq.s32.totalorder %s14, 1
      %p31 = por %p29, %p30
      %p32 = scmp.ne.s32.totalorder %s24, %s27
      %p33 = scmp.eq.s32.totalorder %s14, 0
      %p34 = por %p32, %p33
      %p35 = scmp.ne.s32.totalorder %s24, %s27
      %p36 = scmp.eq.s32.totalorder %s19, 1
      %p37 = por %p35, %p36
      %p38 = scmp.ne.s32.totalorder %s27, %s28
      %p39 = scmp.eq.s32.totalorder %s19, 0
      %p40 = por %p38, %p39
      %p41 = scmp.ne.s32.totalorder %s27, %s28
      %p42 = scmp.eq.s32.totalorder %s20, 1
      %p43 = por %p41, %p42
      %p45 = scmp.ne.s32.totalorder %s28, %s44
      %p46 = scmp.eq.s32.totalorder %s20, 0
      %p47 = por %p45, %p46
      %s49 = sadd.s32 %s48, 1
      %p52 = scmp.eq.s32.totalorder %s14, 1
      %p53 = scmp.ne.s32.totalorder %s48, %s50
      %p54 = scmp.eq.s32.totalorder %s14, 0
      %p55 = por %p53, %p54
      %p56 = scmp.ne.s32.totalorder %s48, %s50
      %p57 = scmp.eq.s32.totalorder %s19, 1
      %p58 = por %p56, %p57
      %p59 = scmp.ne.s32.totalorder %s50, %s51
      %p60 = scmp.eq.s32.totalorder %s19, 0
      %p61 = por %p59, %p60
      %p62 = scmp.ne.s32.totalorder %s50, %s51
      %p63 = scmp.eq.s32.totalorder %s20, 1
      %p64 = por %p62, %p63
      %p66 = scmp.ne.s32.totalorder %s51, %s65
      %p67 = scmp.eq.s32.totalorder %s20, 0
      %p68 = por %p66, %p67
      %s70 = sadd.s32 %s69, 1
      %p73 = scmp.eq.s32.totalorder %s14, 1
      %p74 = scmp.ne.s32.totalorder %s69, %s71
      %p75 = scmp.eq.s32.totalorder %s14, 0
      %p76 = por %p74, %p75
      %p77 = scmp.ne.s32.totalorder %s69, %s71
      %p78 = scmp.eq.s32.totalorder %s19, 1
      %p79 = por %p77, %p78
      %p80 = scmp.ne.s32.totalorder %s71, %s72
      %p81 = scmp.eq.s32.totalorder %s19, 0
      %p82 = por %p80, %p81
      %p83 = scmp.ne.s32.totalorder %s71, %s72
      %p84 = scmp.eq.s32.totalorder %s20, 1
      %p85 = por %p83, %p84
      %p87 = scmp.ne.s32.totalorder %s72, %s86
      %p88 = scmp.eq.s32.totalorder %s20, 0
      %p89 = por %p87, %p88
      %s91 = sadd.s32 %s90, 1
      %p94 = scmp.eq.s32.totalorder %s14, 1
      %p95 = scmp.ne.s32.totalorder %s90, %s92
      %p96 = scmp.eq.s32.totalorder %s14, 0
      %p97 = por %p95, %p96
      %p98 = scmp.ne.s32.totalorder %s90, %s92
      %p99 = scmp.eq.s32.totalorder %s19, 1
      %p100 = por %p98, %p99
      %p101 = scmp.ne.s32.totalorder %s92, %s93
      %p102 = scmp.eq.s32.totalorder %s19, 0
      %p103 = por %p101, %p102
      %p104 = scmp.ne.s32.totalorder %s92, %s93
      %p105 = scmp.eq.s32.totalorder %s20, 1
      %p106 = por %p104, %p105
      %p108 = scmp.ne.s32.totalorder %s93, %s107
      %p109 = scmp.eq.s32.totalorder %s20, 0
      %p110 = por %p108, %p109
      %s111 = ssub.s32 %s14, %s21
      %p112 = scmp.eq.s32.totalorder %s111, 0
      %s114 = sadd.s32 %s113, 1
      %s115 = scalar_select %p112, %s113, %s114
      %p118 = pneg %p112
      %p119 = scmp.eq.s32.totalorder %s14, 1
      %p120 = por %p118, %p119
      %p121 = scmp.ne.s32.totalorder %s113, %s116
      %p122 = scmp.eq.s32.totalorder %s14, 0
      %p123 = por %p121, %p122
      %p124 = scmp.ne.s32.totalorder %s113, %s116
      %p125 = scmp.eq.s32.totalorder %s19, 1
      %p126 = por %p124, %p125
      %p127 = scmp.ne.s32.totalorder %s116, %s117
      %p128 = scmp.eq.s32.totalorder %s19, 0
      %p129 = por %p127, %p128
      %p130 = scmp.ne.s32.totalorder %s116, %s117
      %p131 = scmp.eq.s32.totalorder %s20, 1
      %p132 = por %p130, %p131
      %p134 = scmp.ne.s32.totalorder %s117, %s133
      %p135 = scmp.eq.s32.totalorder %s20, 0
      %p136 = por %p134, %p135
      %p137 = scmp.le.s32.totalorder 1, %s14
      %p138 = scmp.lt.s32.totalorder %s14, 3
      %p139 = pnand %p137, %p138
      %p140 = pneg %p139
      // Predicated region
      $region9: #{tpu_custom_call.1} parent=5 // pred_check
        _
      $region10: #{tpu_custom_call.1} parent=5 // pred_check_branch
        %142 = sbr.rel (%p139) target = $region12
      $region11: #{tpu_custom_call.1} parent=5 // pred_region
        %s143 = ssub.s32 %s14, 1
        // Predicated region
        $region13: #{tpu_custom_call.1} parent=11 // pred_check
          %p144 = pneg %p61
        $region14: #{tpu_custom_call.1} parent=11 // pred_check_branch
          %146 = sbr.rel (%p144) target = $region16
        $region15: #{tpu_custom_call.1} parent=11 // pred_region
          _
        $region16: #{tpu_custom_call.1} parent=11 // pred_fallthru
          _
        // Predicated region
        $region17: #{tpu_custom_call.1} parent=11 // pred_check
          %p147 = pneg %p82
        $region18: #{tpu_custom_call.1} parent=11 // pred_check_branch
          %149 = sbr.rel (%p147) target = $region20
        $region19: #{tpu_custom_call.1} parent=11 // pred_region
          _
        $region20: #{tpu_custom_call.1} parent=11 // pred_fallthru
          _
        // Predicated region
        $region21: #{tpu_custom_call.1} parent=11 // pred_check
          %p150 = pneg %p103
        $region22: #{tpu_custom_call.1} parent=11 // pred_check_branch
          %152 = sbr.rel (%p150) target = $region24
        $region23: #{tpu_custom_call.1} parent=11 // pred_region
          _
        $region24: #{tpu_custom_call.1} parent=11 // pred_fallthru
          _
      $region12: #{tpu_custom_call.1} parent=5 // pred_fallthru
        _
      %p153 = scmp.lt.s32.totalorder %s14, 2
      // Predicated region
      $region25: #{tpu_custom_call.1} parent=5 // pred_check
        %p154 = pneg %p153
      $region26: #{tpu_custom_call.1} parent=5 // pred_check_branch
        %156 = sbr.rel (%p154) target = $region28
      $region27: #{tpu_custom_call.1} parent=5 // pred_region
        // Predicated region
        $region29: #{tpu_custom_call.1} parent=27 // pred_check
          %p157 = pneg %p34
        $region30: #{tpu_custom_call.1} parent=27 // pred_check_branch
          %159 = sbr.rel (%p157) target = $region32
        $region31: #{tpu_custom_call.1} parent=27 // pred_region
          %p160 = scmp.lt.s32.totalorder %s14, 1
          %s161 = scalar_select %p160, %s14, 1
          %s162 = smul.addr %s161, 8
          %s163 = smul.addr %s162, 8
          %s164 = scalar_lea.vmem %s0, %s163
        $region32: #{tpu_custom_call.1} parent=27 // pred_fallthru
          _
      $region28: #{tpu_custom_call.1} parent=5 // pred_fallthru
        _
      %p165 = scmp.le.s32.totalorder 1, %s14
      %p166 = scmp.lt.s32.totalorder %s14, 3
      %p167 = pnand %p165, %p166
      %p168 = pneg %p167
      // Predicated region
      $region33: #{tpu_custom_call.1} parent=5 // pred_check
        _
      $region34: #{tpu_custom_call.1} parent=5 // pred_check_branch
        %170 = sbr.rel (%p167) target = $region36
      $region35: #{tpu_custom_call.1} parent=5 // pred_region
        %s171 = ssub.s32 %s14, 1
        %p172 = scmp.lt.s32.totalorder %s19, 1
        %s173 = scalar_select %p172, %s19, 1
        %s174 = smul.addr %s173, 8
        %s175 = smul.addr %s174, 8
        %s176 = scalar_lea.vmem %s0, %s175
        %p177 = pneg %p40
        %p178 = pneg %p37
        %p179 = pneg %p61
        %p180 = pneg %p58
        %p181 = pneg %p82
        %p182 = pneg %p79
        %p183 = pneg %p103
        %p184 = pneg %p100
        %p185 = pneg %p129
        %p186 = pneg %p126
        %s187 = sand.u32 %s116, 1
        %s188 = scalar_lea.sflag [#allocation4], %s187
        %s189 = sand.u32 %s116, 1
        %s190 = smul.addr %s189, 64
        %s191 = scalar_lea.vmem [#allocation3], %s190
        %p192 = scmp.lt.s32.totalorder %s19, 1
        %s193 = scalar_select %p192, %s19, 1
        %s194 = smul.addr %s193, 8
        %s195 = smul.addr %s194, 8
        %s196 = scalar_lea.vmem %s0, %s195
        %v198 = vld [vmem:[%s1] sm:$0xff]
        %v199 = vld [vmem:[%s1 + $0x8] sm:$0xff]
        %v200 = vld [vmem:[%s1 + $0x10] sm:$0xff]
        %v201 = vld [vmem:[%s1 + $0x18] sm:$0xff]
        %v202 = vld [vmem:[%s1 + $0x20] sm:$0xff]
        %v203 = vld [vmem:[%s1 + $0x28] sm:$0xff]
        %v204 = vpack.c.bf16 %v199, %v198
        %v205 = vpack.c.bf16 %v201, %v200
        %v206 = vpack.c.bf16 %v203, %v202
        %v207 = vld [vmem:[%s2] sm:$0xff]
        %v208 = vld [vmem:[%s2 + $0x8] sm:$0xff]
        %v209 = vld [vmem:[%s2 + $0x10] sm:$0xff]
        %v210 = vld [vmem:[%s2 + $0x18] sm:$0xff]
        %v211 = vld [vmem:[%s2 + $0x20] sm:$0xff]
        %v212 = vld [vmem:[%s2 + $0x28] sm:$0xff]
        %s213 = sld [smem:[#allocation2]]
        %v214 = vld [vmem:[%s196] sm:$0xff]
        %v215 = vld [vmem:[%s196 + $0x8] sm:$0xff]
        %v216 = vld [vmem:[%s196 + $0x10] sm:$0xff]
        %v217 = vld [vmem:[%s196 + $0x18] sm:$0xff]
        %v218 = vld [vmem:[%s196 + $0x20] sm:$0xff]
        %v219 = vld [vmem:[%s196 + $0x28] sm:$0xff]
        %v220 = vld [vmem:[%s196 + $0x30] sm:$0xff]
        %v221 = vld [vmem:[%s196 + $0x38] sm:$0xff]
        %v222 = vpack.c.bf16 %v216, %v214
        %v223 = vpack.c.bf16 %v217, %v215
        %v224 = vpack.c.bf16 %v220, %v218
        %v225 = vpack.c.bf16 %v221, %v219
        %227 = vset.pattern.permute.xlu0 0
        %228 = vperm.xlu0 %227, %v207
        %v229 = vpop.permute.xlu0 %228
        %232 = vset.pattern.permute.xlu0 0
        %233 = vperm.xlu0 %232, %v208
        %v234 = vpop.permute.xlu0 %233
        %237 = vset.pattern.permute.xlu0 0
        %238 = vperm.xlu0 %237, %v209
        %v239 = vpop.permute.xlu0 %238
        %242 = vset.pattern.permute.xlu0 0
        %243 = vperm.xlu0 %242, %v210
        %v244 = vpop.permute.xlu0 %243
        %247 = vset.pattern.permute.xlu0 0
        %248 = vperm.xlu0 %247, %v211
        %v249 = vpop.permute.xlu0 %248
        %252 = vset.pattern.permute.xlu0 0
        %253 = vperm.xlu0 %252, %v212
        %v254 = vpop.permute.xlu0 %253
        %vm256 = vcmask 261120
        %v258 = vsel %vm256, %v204, 0
        %v261 = vsel %vm256, %v205, 0
        %v264 = vsel %vm256, %v206, 0
        %266 = vmatprep.subr.bf16.mxu0 0
        %267 = vmatpush1.bf16.msra.mxu0 0
        %268 = vmatprep.subr.bf16.mxu0 0
        %269 = vmatpush1.bf16.msra.mxu0 0
        %270 = vmatprep.subr.bf16.mxu0 0
        %271 = vmatpush1.bf16.msra.mxu0 0
        %272 = vmatprep.subr.bf16.mxu0 0
        %273 = vmatpush1.bf16.msra.mxu0 0
        %274 = vmatprep.subr.bf16.mxu0 0
        %275 = vmatpush1.bf16.msra.mxu0 0
        %276 = vmatprep.subr.bf16.mxu0 0
        %277 = vmatpush1.bf16.msra.mxu0 0
        %278 = vmatprep.subr.bf16.mxu0 %v225
        %279 = vmatpush1.bf16.msra.mxu0 %v224
        %280 = vmatprep.subr.bf16.mxu0 %v223
        %281 = vmatpush1.bf16.msra.mxu0 %v222
        %282 = vmatprep.subr.bf16.mxu0 0
        %283 = vmatpush2.bf16.msra.mxu0 0
        %284 = vmatprep.subr.bf16.mxu0 0
        %285 = vmatpush2.bf16.msra.mxu0 0
        %286 = vmatprep.subr.bf16.mxu0 0
        %287 = vmatpush2.bf16.msra.mxu0 0
        %288 = vmatprep.subr.bf16.mxu0 0
        %289 = vmatpush2.bf16.msra.mxu0 0
        %290 = vmatprep.subr.bf16.mxu0 0
        %291 = vmatpush2.bf16.msra.mxu0 0
        %292 = vmatprep.subr.bf16.mxu0 0
        %293 = vmatpush2.bf16.msra.mxu0 0
        %294 = vmatprep.subr.bf16.mxu0 0
        %295 = vmatpush2.bf16.msra.mxu0 0
        %296 = vmatprep.subr.bf16.mxu0 0
        %297 = vmatpush2.bf16.msra.mxu0 0
        %298 = vmatprep.mubr.bf16.mxu0 0
        %299 = vmatmul.mubr.bf16.gmra.mxu0 %v258
        %v300 = vpop.f32.mrf.mxu0
        %v301 = vadd.f32 %v229, %v300
        %v302 = vpop.f32.mrf.mxu0
        %v303 = vadd.f32 %v229, %v302
        %v304 = vpop.f32.mrf.mxu0
        %v305 = vadd.f32 %v234, %v304
        %v306 = vpop.f32.mrf.mxu0
        %v307 = vadd.f32 %v234, %v306
        %308 = vmatprep.mubr.bf16.mxu0 0
        %309 = vmatmul.mubr.bf16.gmra.mxu0 %v261
        %v310 = vpop.f32.mrf.mxu0
        %v311 = vadd.f32 %v239, %v310
        %v312 = vpop.f32.mrf.mxu0
        %v313 = vadd.f32 %v239, %v312
        %v314 = vpop.f32.mrf.mxu0
        %v315 = vadd.f32 %v244, %v314
        %v316 = vpop.f32.mrf.mxu0
        %v317 = vadd.f32 %v244, %v316
        %318 = vmatprep.mubr.bf16.mxu0 0
        %319 = vmatmul.mubr.bf16.gmra.mxu0 %v264
        %v320 = vpop.f32.mrf.mxu0
        %v321 = vadd.f32 %v249, %v320
        %v322 = vpop.f32.mrf.mxu0
        %v323 = vadd.f32 %v249, %v322
        %v324 = vpop.f32.mrf.mxu0
        %v325 = vadd.f32 %v254, %v324
        %v326 = vpop.f32.mrf.mxu0
        %v327 = vadd.f32 %v254, %v326
        %328 = vdwg.mxu0
        %v329 = vpack.c.bf16 %v301, %v301
        %v330 = vpack.c.bf16 %v303, %v303
        %v331 = vpack.c.bf16 %v305, %v305
        %v332 = vpack.c.bf16 %v307, %v307
        %v333 = vpack.c.bf16 %v315, %v311
        %v334 = vpack.c.bf16 %v317, %v313
        %v335 = vpack.c.bf16 %v325, %v321
        %v336 = vpack.c.bf16 %v327, %v323
        %337 = vxpose.xlu0.c.b16.start [1/8] %v329, 128
        %338 = vxpose.xlu0.c.b16.cont [2/8] 0, 128
        %339 = vxpose.xlu0.c.b16.cont [3/8] 0, 128
        %340 = vxpose.xlu0.c.b16.cont [4/8] 0, 128
        %341 = vxpose.xlu0.c.b16.cont [5/8] 0, 128
        %342 = vxpose.xlu0.c.b16.cont [6/8] 0, 128
        %343 = vxpose.xlu0.c.b16.cont [7/8] 0, 128
        %344 = vxpose.xlu0.c.b16.end [8/8] 0, 128
        %v345 = vpop.trf.xlu0
        %v346 = vpop.trf.xlu0
        %v347 = vpop.trf.xlu0
        %v348 = vpop.trf.xlu0
        %v349 = vpop.trf.xlu0
        %v350 = vpop.trf.xlu0
        %v351 = vpop.trf.xlu0
        %v352 = vpop.trf.xlu0
        %353 = vxpose.xlu0.c.b16.start [1/8] %v330, 128
        %354 = vxpose.xlu0.c.b16.cont [2/8] 0, 128
        %355 = vxpose.xlu0.c.b16.cont [3/8] 0, 128
        %356 = vxpose.xlu0.c.b16.cont [4/8] 0, 128
        %357 = vxpose.xlu0.c.b16.cont [5/8] 0, 128
        %358 = vxpose.xlu0.c.b16.cont [6/8] 0, 128
        %359 = vxpose.xlu0.c.b16.cont [7/8] 0, 128
        %360 = vxpose.xlu0.c.b16.end [8/8] 0, 128
        %v361 = vpop.trf.xlu0
        %v362 = vpop.trf.xlu0
        %v363 = vpop.trf.xlu0
        %v364 = vpop.trf.xlu0
        %v365 = vpop.trf.xlu0
        %v366 = vpop.trf.xlu0
        %v367 = vpop.trf.xlu0
        %v368 = vpop.trf.xlu0
        %vm369 = vcmask 64512
        %v371 = vsel %vm369, %v345, 0
        %v374 = vsel %vm369, %v346, 0
        %v377 = vsel %vm369, %v347, 0
        %v380 = vsel %vm369, %v348, 0
        %v383 = vsel %vm369, %v349, 0
        %v386 = vsel %vm369, %v350, 0
        %v389 = vsel %vm369, %v351, 0
        %v392 = vsel %vm369, %v352, 0
        %v395 = vsel %vm369, %v361, 0
        %v398 = vsel %vm369, %v362, 0
        %v401 = vsel %vm369, %v363, 0
        %v404 = vsel %vm369, %v364, 0
        %v407 = vsel %vm369, %v365, 0
        %v410 = vsel %vm369, %v366, 0
        %v413 = vsel %vm369, %v367, 0
        %v416 = vsel %vm369, %v368, 0
        %vm418 = vcmask 1043456
        %v420 = vsel %vm418, %v331, 0
        %v423 = vsel %vm418, %v332, 0
        %425 = vmatprep.subr.bf16.mxu0 0
        %426 = vmatpush1.bf16.msra.mxu0 0
        %427 = vmatprep.subr.bf16.mxu0 0
        %428 = vmatpush1.bf16.msra.mxu0 0
        %429 = vmatprep.subr.bf16.mxu0 0
        %430 = vmatpush1.bf16.msra.mxu0 0
        %431 = vmatprep.subr.bf16.mxu0 0
        %432 = vmatpush1.bf16.msra.mxu0 0
        %433 = vmatprep.subr.bf16.mxu0 0
        %434 = vmatpush1.bf16.msra.mxu0 0
        %435 = vmatprep.subr.bf16.mxu0 0
        %436 = vmatpush1.bf16.msra.mxu0 0
        %437 = vmatprep.subr.bf16.mxu0 0
        %438 = vmatpush1.bf16.msra.mxu0 0
        %439 = vmatprep.subr.bf16.mxu0 %v423
        %440 = vmatpush1.bf16.msra.mxu0 %v420
        %441 = vmatprep.subr.bf16.mxu0 0
        %442 = vmatpush2.bf16.msra.mxu0 0
        %443 = vmatprep.subr.bf16.mxu0 0
        %444 = vmatpush2.bf16.msra.mxu0 0
        %445 = vmatprep.subr.bf16.mxu0 0
        %446 = vmatpush2.bf16.msra.mxu0 0
        %447 = vmatprep.subr.bf16.mxu0 0
        %448 = vmatpush2.bf16.msra.mxu0 0
        %449 = vmatprep.subr.bf16.mxu0 0
        %450 = vmatpush2.bf16.msra.mxu0 0
        %451 = vmatprep.subr.bf16.mxu0 0
        %452 = vmatpush2.bf16.msra.mxu0 0
        %453 = vmatprep.subr.bf16.mxu0 0
        %454 = vmatpush2.bf16.msra.mxu0 0
        %455 = vmatprep.subr.bf16.mxu0 0
        %456 = vmatpush2.bf16.msra.mxu0 0
        %457 = vmatprep.mubr.bf16.mxu0 0
        %458 = vmatmul.mubr.bf16.gmra.mxu0 %v371
        %v459 = vpop.f32.mrf.mxu0
        %v460 = vadd.f32 0.0, %v459
        %v461 = vpop.f32.mrf.mxu0
        %v462 = vadd.f32 0.0, %v461
        %v463 = vpop.f32.mrf.mxu0
        %v464 = vadd.f32 0.0, %v463
        %v465 = vpop.f32.mrf.mxu0
        %v466 = vadd.f32 0.0, %v465
        %467 = vmatprep.mubr.bf16.mxu0 0
        %468 = vmatmul.mubr.bf16.gmra.mxu0 %v374
        %v469 = vpop.f32.mrf.mxu0
        %v470 = vadd.f32 0.0, %v469
        %v471 = vpop.f32.mrf.mxu0
        %v472 = vadd.f32 0.0, %v471
        %v473 = vpop.f32.mrf.mxu0
        %v474 = vadd.f32 0.0, %v473
        %v475 = vpop.f32.mrf.mxu0
        %v476 = vadd.f32 0.0, %v475
        %477 = vmatprep.mubr.bf16.mxu0 0
        %478 = vmatmul.mubr.bf16.gmra.mxu0 %v377
        %v479 = vpop.f32.mrf.mxu0
        %v480 = vadd.f32 0.0, %v479
        %v481 = vpop.f32.mrf.mxu0
        %v482 = vadd.f32 0.0, %v481
        %v483 = vpop.f32.mrf.mxu0
        %v484 = vadd.f32 0.0, %v483
        %v485 = vpop.f32.mrf.mxu0
        %v486 = vadd.f32 0.0, %v485
        %487 = vmatprep.mubr.bf16.mxu0 0
        %488 = vmatmul.mubr.bf16.gmra.mxu0 %v380
        %v489 = vpop.f32.mrf.mxu0
        %v490 = vadd.f32 0.0, %v489
        %v491 = vpop.f32.mrf.mxu0
        %v492 = vadd.f32 0.0, %v491
        %v493 = vpop.f32.mrf.mxu0
        %v494 = vadd.f32 0.0, %v493
        %v495 = vpop.f32.mrf.mxu0
        %v496 = vadd.f32 0.0, %v495
        %497 = vmatprep.mubr.bf16.mxu0 0
        %498 = vmatmul.mubr.bf16.gmra.mxu0 %v383
        %v499 = vpop.f32.mrf.mxu0
        %v500 = vadd.f32 0.0, %v499
        %v501 = vpop.f32.mrf.mxu0
        %v502 = vadd.f32 0.0, %v501
        %v503 = vpop.f32.mrf.mxu0
        %v504 = vadd.f32 0.0, %v503
        %v505 = vpop.f32.mrf.mxu0
        %v506 = vadd.f32 0.0, %v505
        %507 = vmatprep.mubr.bf16.mxu0 0
        %508 = vmatmul.mubr.bf16.gmra.mxu0 %v386
        %v509 = vpop.f32.mrf.mxu0
        %v510 = vadd.f32 0.0, %v509
        %v511 = vpop.f32.mrf.mxu0
        %v512 = vadd.f32 0.0, %v511
        %v513 = vpop.f32.mrf.mxu0
        %v514 = vadd.f32 0.0, %v513
        %v515 = vpop.f32.mrf.mxu0
        %v516 = vadd.f32 0.0, %v515
        %517 = vmatprep.mubr.bf16.mxu0 0
        %518 = vmatmul.mubr.bf16.gmra.mxu0 %v389
        %v519 = vpop.f32.mrf.mxu0
        %v520 = vadd.f32 0.0, %v519
        %v521 = vpop.f32.mrf.mxu0
        %v522 = vadd.f32 0.0, %v521
        %v523 = vpop.f32.mrf.mxu0
        %v524 = vadd.f32 0.0, %v523
        %v525 = vpop.f32.mrf.mxu0
        %v526 = vadd.f32 0.0, %v525
        %527 = vmatprep.mubr.bf16.mxu0 0
        %528 = vmatmul.mubr.bf16.gmra.mxu0 %v392
        %v529 = vpop.f32.mrf.mxu0
        %v530 = vadd.f32 0.0, %v529
        %v531 = vpop.f32.mrf.mxu0
        %v532 = vadd.f32 0.0, %v531
        %v533 = vpop.f32.mrf.mxu0
        %v534 = vadd.f32 0.0, %v533
        %v535 = vpop.f32.mrf.mxu0
        %v536 = vadd.f32 0.0, %v535
        %537 = vmatprep.mubr.bf16.mxu0 0
        %538 = vmatmul.mubr.bf16.gmra.mxu0 %v395
        %v539 = vpop.f32.mrf.mxu0
        %v540 = vadd.f32 0.0, %v539
        %v541 = vpop.f32.mrf.mxu0
        %v542 = vadd.f32 0.0, %v541
        %v543 = vpop.f32.mrf.mxu0
        %v544 = vadd.f32 0.0, %v543
        %v545 = vpop.f32.mrf.mxu0
        %v546 = vadd.f32 0.0, %v545
        %547 = vmatprep.mubr.bf16.mxu0 0
        %548 = vmatmul.mubr.bf16.gmra.mxu0 %v398
        %v549 = vpop.f32.mrf.mxu0
        %v550 = vadd.f32 0.0, %v549
        %v551 = vpop.f32.mrf.mxu0
        %v552 = vadd.f32 0.0, %v551
        %v553 = vpop.f32.mrf.mxu0
        %v554 = vadd.f32 0.0, %v553
        %v555 = vpop.f32.mrf.mxu0
        %v556 = vadd.f32 0.0, %v555
        %557 = vmatprep.mubr.bf16.mxu0 0
        %558 = vmatmul.mubr.bf16.gmra.mxu0 %v401
        %v559 = vpop.f32.mrf.mxu0
        %v560 = vadd.f32 0.0, %v559
        %v561 = vpop.f32.mrf.mxu0
        %v562 = vadd.f32 0.0, %v561
        %v563 = vpop.f32.mrf.mxu0
        %v564 = vadd.f32 0.0, %v563
        %v565 = vpop.f32.mrf.mxu0
        %v566 = vadd.f32 0.0, %v565
        %567 = vmatprep.mubr.bf16.mxu0 0
        %568 = vmatmul.mubr.bf16.gmra.mxu0 %v404
        %v569 = vpop.f32.mrf.mxu0
        %v570 = vadd.f32 0.0, %v569
        %v571 = vpop.f32.mrf.mxu0
        %v572 = vadd.f32 0.0, %v571
        %v573 = vpop.f32.mrf.mxu0
        %v574 = vadd.f32 0.0, %v573
        %v575 = vpop.f32.mrf.mxu0
        %v576 = vadd.f32 0.0, %v575
        %577 = vmatprep.mubr.bf16.mxu0 0
        %578 = vmatmul.mubr.bf16.gmra.mxu0 %v407
        %v579 = vpop.f32.mrf.mxu0
        %v580 = vadd.f32 0.0, %v579
        %v581 = vpop.f32.mrf.mxu0
        %v582 = vadd.f32 0.0, %v581
        %v583 = vpop.f32.mrf.mxu0
        %v584 = vadd.f32 0.0, %v583
        %v585 = vpop.f32.mrf.mxu0
        %v586 = vadd.f32 0.0, %v585
        %587 = vmatprep.mubr.bf16.mxu0 0
        %588 = vmatmul.mubr.bf16.gmra.mxu0 %v410
        %v589 = vpop.f32.mrf.mxu0
        %v590 = vadd.f32 0.0, %v589
        %v591 = vpop.f32.mrf.mxu0
        %v592 = vadd.f32 0.0, %v591
        %v593 = vpop.f32.mrf.mxu0
        %v594 = vadd.f32 0.0, %v593
        %v595 = vpop.f32.mrf.mxu0
        %v596 = vadd.f32 0.0, %v595
        %597 = vmatprep.mubr.bf16.mxu0 0
        %598 = vmatmul.mubr.bf16.gmra.mxu0 %v413
        %v599 = vpop.f32.mrf.mxu0
        %v600 = vadd.f32 0.0, %v599
        %v601 = vpop.f32.mrf.mxu0
        %v602 = vadd.f32 0.0, %v601
        %v603 = vpop.f32.mrf.mxu0
        %v604 = vadd.f32 0.0, %v603
        %v605 = vpop.f32.mrf.mxu0
        %v606 = vadd.f32 0.0, %v605
        %607 = vmatprep.mubr.bf16.mxu0 0
        %608 = vmatmul.mubr.bf16.gmra.mxu0 %v416
        %v609 = vpop.f32.mrf.mxu0
        %v610 = vadd.f32 0.0, %v609
        %v611 = vpop.f32.mrf.mxu0
        %v612 = vadd.f32 0.0, %v611
        %v613 = vpop.f32.mrf.mxu0
        %v614 = vadd.f32 0.0, %v613
        %v615 = vpop.f32.mrf.mxu0
        %v616 = vadd.f32 0.0, %v615
        %617 = vdwg.mxu0
        %v618 = vmax.f32 %v460, %v462
        %619 = vmax.xlane.f32.xlu0 %v618
        %v620 = vpop.xlane.xlu0 %619
        %v621 = vmax.f32 %v464, %v466
        %622 = vmax.xlane.f32.xlu0 %v621
        %v623 = vpop.xlane.xlu0 %622
        %v624 = vmax.f32 %v470, %v472
        %625 = vmax.xlane.f32.xlu0 %v624
        %v626 = vpop.xlane.xlu0 %625
        %v627 = vmax.f32 %v474, %v476
        %628 = vmax.xlane.f32.xlu0 %v627
        %v629 = vpop.xlane.xlu0 %628
        %v630 = vmax.f32 %v480, %v482
        %631 = vmax.xlane.f32.xlu0 %v630
        %v632 = vpop.xlane.xlu0 %631
        %v633 = vmax.f32 %v484, %v486
        %634 = vmax.xlane.f32.xlu0 %v633
        %v635 = vpop.xlane.xlu0 %634
        %v636 = vmax.f32 %v490, %v492
        %637 = vmax.xlane.f32.xlu0 %v636
        %v638 = vpop.xlane.xlu0 %637
        %v639 = vmax.f32 %v494, %v496
        %640 = vmax.xlane.f32.xlu0 %v639
        %v641 = vpop.xlane.xlu0 %640
        %v642 = vmax.f32 %v500, %v502
        %643 = vmax.xlane.f32.xlu0 %v642
        %v644 = vpop.xlane.xlu0 %643
        %v645 = vmax.f32 %v504, %v506
        %646 = vmax.xlane.f32.xlu0 %v645
        %v647 = vpop.xlane.xlu0 %646
        %v648 = vmax.f32 %v510, %v512
        %649 = vmax.xlane.f32.xlu0 %v648
        %v650 = vpop.xlane.xlu0 %649
        %v651 = vmax.f32 %v514, %v516
        %652 = vmax.xlane.f32.xlu0 %v651
        %v653 = vpop.xlane.xlu0 %652
        %v654 = vmax.f32 %v520, %v522
        %655 = vmax.xlane.f32.xlu0 %v654
        %v656 = vpop.xlane.xlu0 %655
        %v657 = vmax.f32 %v524, %v526
        %658 = vmax.xlane.f32.xlu0 %v657
        %v659 = vpop.xlane.xlu0 %658
        %v660 = vmax.f32 %v530, %v532
        %661 = vmax.xlane.f32.xlu0 %v660
        %v662 = vpop.xlane.xlu0 %661
        %v663 = vmax.f32 %v534, %v536
        %664 = vmax.xlane.f32.xlu0 %v663
        %v665 = vpop.xlane.xlu0 %664
        %v666 = vmax.f32 %v540, %v542
        %667 = vmax.xlane.f32.xlu0 %v666
        %v668 = vpop.xlane.xlu0 %667
        %v669 = vmax.f32 %v544, %v546
        %670 = vmax.xlane.f32.xlu0 %v669
        %v671 = vpop.xlane.xlu0 %670
        %v672 = vmax.f32 %v550, %v552
        %673 = vmax.xlane.f32.xlu0 %v672
        %v674 = vpop.xlane.xlu0 %673
        %v675 = vmax.f32 %v554, %v556
        %676 = vmax.xlane.f32.xlu0 %v675
        %v677 = vpop.xlane.xlu0 %676
        %v678 = vmax.f32 %v560, %v562
        %679 = vmax.xlane.f32.xlu0 %v678
        %v680 = vpop.xlane.xlu0 %679
        %v681 = vmax.f32 %v564, %v566
        %682 = vmax.xlane.f32.xlu0 %v681
        %v683 = vpop.xlane.xlu0 %682
        %v684 = vmax.f32 %v570, %v572
        %685 = vmax.xlane.f32.xlu0 %v684
        %v686 = vpop.xlane.xlu0 %685
        %v687 = vmax.f32 %v574, %v576
        %688 = vmax.xlane.f32.xlu0 %v687
        %v689 = vpop.xlane.xlu0 %688
        %v690 = vmax.f32 %v580, %v582
        %691 = vmax.xlane.f32.xlu0 %v690
        %v692 = vpop.xlane.xlu0 %691
        %v693 = vmax.f32 %v584, %v586
        %694 = vmax.xlane.f32.xlu0 %v693
        %v695 = vpop.xlane.xlu0 %694
        %v696 = vmax.f32 %v590, %v592
        %697 = vmax.xlane.f32.xlu0 %v696
        %v698 = vpop.xlane.xlu0 %697
        %v699 = vmax.f32 %v594, %v596
        %700 = vmax.xlane.f32.xlu0 %v699
        %v701 = vpop.xlane.xlu0 %700
        %v702 = vmax.f32 %v600, %v602
        %703 = vmax.xlane.f32.xlu0 %v702
        %v704 = vpop.xlane.xlu0 %703
        %v705 = vmax.f32 %v604, %v606
        %706 = vmax.xlane.f32.xlu0 %v705
        %v707 = vpop.xlane.xlu0 %706
        %v708 = vmax.f32 %v610, %v612
        %709 = vmax.xlane.f32.xlu0 %v708
        %v710 = vpop.xlane.xlu0 %709
        %v711 = vmax.f32 %v614, %v616
        %712 = vmax.xlane.f32.xlu0 %v711
        %v713 = vpop.xlane.xlu0 %712
        %v714 = vsub.f32 %v460, %v620
        %v715 = vsub.f32 %v462, %v620
        %v716 = vsub.f32 %v464, %v623
        %v717 = vsub.f32 %v466, %v623
        %v718 = vsub.f32 %v470, %v626
        %v719 = vsub.f32 %v472, %v626
        %v720 = vsub.f32 %v474, %v629
        %v721 = vsub.f32 %v476, %v629
        %v722 = vsub.f32 %v480, %v632
        %v723 = vsub.f32 %v482, %v632
        %v724 = vsub.f32 %v484, %v635
        %v725 = vsub.f32 %v486, %v635
        %v726 = vsub.f32 %v490, %v638
        %v727 = vsub.f32 %v492, %v638
        %v728 = vsub.f32 %v494, %v641
        %v729 = vsub.f32 %v496, %v641
        %v730 = vsub.f32 %v500, %v644
        %v731 = vsub.f32 %v502, %v644
        %v732 = vsub.f32 %v504, %v647
        %v733 = vsub.f32 %v506, %v647
        %v734 = vsub.f32 %v510, %v650
        %v735 = vsub.f32 %v512, %v650
        %v736 = vsub.f32 %v514, %v653
        %v737 = vsub.f32 %v516, %v653
        %v738 = vsub.f32 %v520, %v656
        %v739 = vsub.f32 %v522, %v656
        %v740 = vsub.f32 %v524, %v659
        %v741 = vsub.f32 %v526, %v659
        %v742 = vsub.f32 %v530, %v662
        %v743 = vsub.f32 %v532, %v662
        %v744 = vsub.f32 %v534, %v665
        %v745 = vsub.f32 %v536, %v665
        %v746 = vsub.f32 %v540, %v668
        %v747 = vsub.f32 %v542, %v668
        %v748 = vsub.f32 %v544, %v671
        %v749 = vsub.f32 %v546, %v671
        %v750 = vsub.f32 %v550, %v674
        %v751 = vsub.f32 %v552, %v674
        %v752 = vsub.f32 %v554, %v677
        %v753 = vsub.f32 %v556, %v677
        %v754 = vsub.f32 %v560, %v680
        %v755 = vsub.f32 %v562, %v680
        %v756 = vsub.f32 %v564, %v683
        %v757 = vsub.f32 %v566, %v683
        %v758 = vsub.f32 %v570, %v686
        %v759 = vsub.f32 %v572, %v686
        %v760 = vsub.f32 %v574, %v689
        %v761 = vsub.f32 %v576, %v689
        %v762 = vsub.f32 %v580, %v692
        %v763 = vsub.f32 %v582, %v692
        %v764 = vsub.f32 %v584, %v695
        %v765 = vsub.f32 %v586, %v695
        %v766 = vsub.f32 %v590, %v698
        %v767 = vsub.f32 %v592, %v698
        %v768 = vsub.f32 %v594, %v701
        %v769 = vsub.f32 %v596, %v701
        %v770 = vsub.f32 %v600, %v704
        %v771 = vsub.f32 %v602, %v704
        %v772 = vsub.f32 %v604, %v707
        %v773 = vsub.f32 %v606, %v707
        %v774 = vsub.f32 %v610, %v710
        %v775 = vsub.f32 %v612, %v710
        %v776 = vsub.f32 %v614, %v713
        %v777 = vsub.f32 %v616, %v713
        %v778 = vmul.f32 %v714, 1.442695
        %v779 = vpow.pop %v778
        %v780 = vmul.f32 %v715, 1.442695
        %v781 = vpow.pop %v780
        %v782 = vmul.f32 %v716, 1.442695
        %v783 = vpow.pop %v782
        %v784 = vmul.f32 %v717, 1.442695
        %v785 = vpow.pop %v784
        %v786 = vmul.f32 %v718, 1.442695
        %v787 = vpow.pop %v786
        %v788 = vmul.f32 %v719, 1.442695
        %v789 = vpow.pop %v788
        %v790 = vmul.f32 %v720, 1.442695
        %v791 = vpow.pop %v790
        %v792 = vmul.f32 %v721, 1.442695
        %v793 = vpow.pop %v792
        %v794 = vmul.f32 %v722, 1.442695
        %v795 = vpow.pop %v794
        %v796 = vmul.f32 %v723, 1.442695
        %v797 = vpow.pop %v796
        %v798 = vmul.f32 %v724, 1.442695
        %v799 = vpow.pop %v798
        %v800 = vmul.f32 %v725, 1.442695
        %v801 = vpow.pop %v800
        %v802 = vmul.f32 %v726, 1.442695
        %v803 = vpow.pop %v802
        %v804 = vmul.f32 %v727, 1.442695
        %v805 = vpow.pop %v804
        %v806 = vmul.f32 %v728, 1.442695
        %v807 = vpow.pop %v806
        %v808 = vmul.f32 %v729, 1.442695
        %v809 = vpow.pop %v808
        %v810 = vmul.f32 %v730, 1.442695
        %v811 = vpow.pop %v810
        %v812 = vmul.f32 %v731, 1.442695
        %v813 = vpow.pop %v812
        %v814 = vmul.f32 %v732, 1.442695
        %v815 = vpow.pop %v814
        %v816 = vmul.f32 %v733, 1.442695
        %v817 = vpow.pop %v816
        %v818 = vmul.f32 %v734, 1.442695
        %v819 = vpow.pop %v818
        %v820 = vmul.f32 %v735, 1.442695
        %v821 = vpow.pop %v820
        %v822 = vmul.f32 %v736, 1.442695
        %v823 = vpow.pop %v822
        %v824 = vmul.f32 %v737, 1.442695
        %v825 = vpow.pop %v824
        %v826 = vmul.f32 %v738, 1.442695
        %v827 = vpow.pop %v826
        %v828 = vmul.f32 %v739, 1.442695
        %v829 = vpow.pop %v828
        %v830 = vmul.f32 %v740, 1.442695
        %v831 = vpow.pop %v830
        %v832 = vmul.f32 %v741, 1.442695
        %v833 = vpow.pop %v832
        %v834 = vmul.f32 %v742, 1.442695
        %v835 = vpow.pop %v834
        %v836 = vmul.f32 %v743, 1.442695
        %v837 = vpow.pop %v836
        %v838 = vmul.f32 %v744, 1.442695
        %v839 = vpow.pop %v838
        %v840 = vmul.f32 %v745, 1.442695
        %v841 = vpow.pop %v840
        %v842 = vmul.f32 %v746, 1.442695
        %v843 = vpow.pop %v842
        %v844 = vmul.f32 %v747, 1.442695
        %v845 = vpow.pop %v844
        %v846 = vmul.f32 %v748, 1.442695
        %v847 = vpow.pop %v846
        %v848 = vmul.f32 %v749, 1.442695
        %v849 = vpow.pop %v848
        %v850 = vmul.f32 %v750, 1.442695
        %v851 = vpow.pop %v850
        %v852 = vmul.f32 %v751, 1.442695
        %v853 = vpow.pop %v852
        %v854 = vmul.f32 %v752, 1.442695
        %v855 = vpow.pop %v854
        %v856 = vmul.f32 %v753, 1.442695
        %v857 = vpow.pop %v856
        %v858 = vmul.f32 %v754, 1.442695
        %v859 = vpow.pop %v858
        %v860 = vmul.f32 %v755, 1.442695
        %v861 = vpow.pop %v860
        %v862 = vmul.f32 %v756, 1.442695
        %v863 = vpow.pop %v862
        %v864 = vmul.f32 %v757, 1.442695
        %v865 = vpow.pop %v864
        %v866 = vmul.f32 %v758, 1.442695
        %v867 = vpow.pop %v866
        %v868 = vmul.f32 %v759, 1.442695
        %v869 = vpow.pop %v868
        %v870 = vmul.f32 %v760, 1.442695
        %v871 = vpow.pop %v870
        %v872 = vmul.f32 %v761, 1.442695
        %v873 = vpow.pop %v872
        %v874 = vmul.f32 %v762, 1.442695
        %v875 = vpow.pop %v874
        %v876 = vmul.f32 %v763, 1.442695
        %v877 = vpow.pop %v876
        %v878 = vmul.f32 %v764, 1.442695
        %v879 = vpow.pop %v878
        %v880 = vmul.f32 %v765, 1.442695
        %v881 = vpow.pop %v880
        %v882 = vmul.f32 %v766, 1.442695
        %v883 = vpow.pop %v882
        %v884 = vmul.f32 %v767, 1.442695
        %v885 = vpow.pop %v884
        %v886 = vmul.f32 %v768, 1.442695
        %v887 = vpow.pop %v886
        %v888 = vmul.f32 %v769, 1.442695
        %v889 = vpow.pop %v888
        %v890 = vmul.f32 %v770, 1.442695
        %v891 = vpow.pop %v890
        %v892 = vmul.f32 %v771, 1.442695
        %v893 = vpow.pop %v892
        %v894 = vmul.f32 %v772, 1.442695
        %v895 = vpow.pop %v894
        %v896 = vmul.f32 %v773, 1.442695
        %v897 = vpow.pop %v896
        %v898 = vmul.f32 %v774, 1.442695
        %v899 = vpow.pop %v898
        %v900 = vmul.f32 %v775, 1.442695
        %v901 = vpow.pop %v900
        %v902 = vmul.f32 %v776, 1.442695
        %v903 = vpow.pop %v902
        %v904 = vmul.f32 %v777, 1.442695
        %v905 = vpow.pop %v904
        %v906 = vadd.f32 %v779, %v781
        %907 = vadd.xlane.f32.xlu0 %v906
        %v908 = vpop.xlane.xlu0 %907
        %v909 = vadd.f32 %v783, %v785
        %910 = vadd.xlane.f32.xlu0 %v909
        %v911 = vpop.xlane.xlu0 %910
        %v912 = vadd.f32 %v787, %v789
        %913 = vadd.xlane.f32.xlu0 %v912
        %v914 = vpop.xlane.xlu0 %913
        %v915 = vadd.f32 %v791, %v793
        %916 = vadd.xlane.f32.xlu0 %v915
        %v917 = vpop.xlane.xlu0 %916
        %v918 = vadd.f32 %v795, %v797
        %919 = vadd.xlane.f32.xlu0 %v918
        %v920 = vpop.xlane.xlu0 %919
        %v921 = vadd.f32 %v799, %v801
        %922 = vadd.xlane.f32.xlu0 %v921
        %v923 = vpop.xlane.xlu0 %922
        %v924 = vadd.f32 %v803, %v805
        %925 = vadd.xlane.f32.xlu0 %v924
        %v926 = vpop.xlane.xlu0 %925
        %v927 = vadd.f32 %v807, %v809
        %928 = vadd.xlane.f32.xlu0 %v927
        %v929 = vpop.xlane.xlu0 %928
        %v930 = vadd.f32 %v811, %v813
        %931 = vadd.xlane.f32.xlu0 %v930
        %v932 = vpop.xlane.xlu0 %931
        %v933 = vadd.f32 %v815, %v817
        %934 = vadd.xlane.f32.xlu0 %v933
        %v935 = vpop.xlane.xlu0 %934
        %v936 = vadd.f32 %v819, %v821
        %937 = vadd.xlane.f32.xlu0 %v936
        %v938 = vpop.xlane.xlu0 %937
        %v939 = vadd.f32 %v823, %v825
        %940 = vadd.xlane.f32.xlu0 %v939
        %v941 = vpop.xlane.xlu0 %940
        %v942 = vadd.f32 %v827, %v829
        %943 = vadd.xlane.f32.xlu0 %v942
        %v944 = vpop.xlane.xlu0 %943
        %v945 = vadd.f32 %v831, %v833
        %946 = vadd.xlane.f32.xlu0 %v945
        %v947 = vpop.xlane.xlu0 %946
        %v948 = vadd.f32 %v835, %v837
        %949 = vadd.xlane.f32.xlu0 %v948
        %v950 = vpop.xlane.xlu0 %949
        %v951 = vadd.f32 %v839, %v841
        %952 = vadd.xlane.f32.xlu0 %v951
        %v953 = vpop.xlane.xlu0 %952
        %v954 = vadd.f32 %v843, %v845
        %955 = vadd.xlane.f32.xlu0 %v954
        %v956 = vpop.xlane.xlu0 %955
        %v957 = vadd.f32 %v847, %v849
        %958 = vadd.xlane.f32.xlu0 %v957
        %v959 = vpop.xlane.xlu0 %958
        %v960 = vadd.f32 %v851, %v853
        %961 = vadd.xlane.f32.xlu0 %v960
        %v962 = vpop.xlane.xlu0 %961
        %v963 = vadd.f32 %v855, %v857
        %964 = vadd.xlane.f32.xlu0 %v963
        %v965 = vpop.xlane.xlu0 %964
        %v966 = vadd.f32 %v859, %v861
        %967 = vadd.xlane.f32.xlu0 %v966
        %v968 = vpop.xlane.xlu0 %967
        %v969 = vadd.f32 %v863, %v865
        %970 = vadd.xlane.f32.xlu0 %v969
        %v971 = vpop.xlane.xlu0 %970
        %v972 = vadd.f32 %v867, %v869
        %973 = vadd.xlane.f32.xlu0 %v972
        %v974 = vpop.xlane.xlu0 %973
        %v975 = vadd.f32 %v871, %v873
        %976 = vadd.xlane.f32.xlu0 %v975
        %v977 = vpop.xlane.xlu0 %976
        %v978 = vadd.f32 %v875, %v877
        %979 = vadd.xlane.f32.xlu0 %v978
        %v980 = vpop.xlane.xlu0 %979
        %v981 = vadd.f32 %v879, %v881
        %982 = vadd.xlane.f32.xlu0 %v981
        %v983 = vpop.xlane.xlu0 %982
        %v984 = vadd.f32 %v883, %v885
        %985 = vadd.xlane.f32.xlu0 %v984
        %v986 = vpop.xlane.xlu0 %985
        %v987 = vadd.f32 %v887, %v889
        %988 = vadd.xlane.f32.xlu0 %v987
        %v989 = vpop.xlane.xlu0 %988
        %v990 = vadd.f32 %v891, %v893
        %991 = vadd.xlane.f32.xlu0 %v990
        %v992 = vpop.xlane.xlu0 %991
        %v993 = vadd.f32 %v895, %v897
        %994 = vadd.xlane.f32.xlu0 %v993
        %v995 = vpop.xlane.xlu0 %994
        %v996 = vadd.f32 %v899, %v901
        %997 = vadd.xlane.f32.xlu0 %v996
        %v998 = vpop.xlane.xlu0 %997
        %v999 = vadd.f32 %v903, %v905
        %1000 = vadd.xlane.f32.xlu0 %v999
        %v1001 = vpop.xlane.xlu0 %1000
        %v1002 = vrcp.pop %v908
        %v1003 = vrcp.pop %v911
        %v1004 = vrcp.pop %v914
        %v1005 = vrcp.pop %v917
        %v1006 = vrcp.pop %v920
        %v1007 = vrcp.pop %v923
        %v1008 = vrcp.pop %v926
        %v1009 = vrcp.pop %v929
        %v1010 = vrcp.pop %v932
        %v1011 = vrcp.pop %v935
        %v1012 = vrcp.pop %v938
        %v1013 = vrcp.pop %v941
        %v1014 = vrcp.pop %v944
        %v1015 = vrcp.pop %v947
        %v1016 = vrcp.pop %v950
        %v1017 = vrcp.pop %v953
        %v1018 = vrcp.pop %v956
        %v1019 = vrcp.pop %v959
        %v1020 = vrcp.pop %v962
        %v1021 = vrcp.pop %v965
        %v1022 = vrcp.pop %v968
        %v1023 = vrcp.pop %v971
        %v1024 = vrcp.pop %v974
        %v1025 = vrcp.pop %v977
        %v1026 = vrcp.pop %v980
        %v1027 = vrcp.pop %v983
        %v1028 = vrcp.pop %v986
        %v1029 = vrcp.pop %v989
        %v1030 = vrcp.pop %v992
        %v1031 = vrcp.pop %v995
        %v1032 = vrcp.pop %v998
        %v1033 = vrcp.pop %v1001
        %v1034 = vmul.f32 %v779, %v1002
        %v1035 = vmul.f32 %v781, %v1002
        %v1036 = vmul.f32 %v783, %v1003
        %v1037 = vmul.f32 %v785, %v1003
        %v1038 = vmul.f32 %v787, %v1004
        %v1039 = vmul.f32 %v789, %v1004
        %v1040 = vmul.f32 %v791, %v1005
        %v1041 = vmul.f32 %v793, %v1005
        %v1042 = vmul.f32 %v795, %v1006
        %v1043 = vmul.f32 %v797, %v1006
        %v1044 = vmul.f32 %v799, %v1007
        %v1045 = vmul.f32 %v801, %v1007
        %v1046 = vmul.f32 %v803, %v1008
        %v1047 = vmul.f32 %v805, %v1008
        %v1048 = vmul.f32 %v807, %v1009
        %v1049 = vmul.f32 %v809, %v1009
        %v1050 = vmul.f32 %v811, %v1010
        %v1051 = vmul.f32 %v813, %v1010
        %v1052 = vmul.f32 %v815, %v1011
        %v1053 = vmul.f32 %v817, %v1011
        %v1054 = vmul.f32 %v819, %v1012
        %v1055 = vmul.f32 %v821, %v1012
        %v1056 = vmul.f32 %v823, %v1013
        %v1057 = vmul.f32 %v825, %v1013
        %v1058 = vmul.f32 %v827, %v1014
        %v1059 = vmul.f32 %v829, %v1014
        %v1060 = vmul.f32 %v831, %v1015
        %v1061 = vmul.f32 %v833, %v1015
        %v1062 = vmul.f32 %v835, %v1016
        %v1063 = vmul.f32 %v837, %v1016
        %v1064 = vmul.f32 %v839, %v1017
        %v1065 = vmul.f32 %v841, %v1017
        %v1066 = vmul.f32 %v843, %v1018
        %v1067 = vmul.f32 %v845, %v1018
        %v1068 = vmul.f32 %v847, %v1019
        %v1069 = vmul.f32 %v849, %v1019
        %v1070 = vmul.f32 %v851, %v1020
        %v1071 = vmul.f32 %v853, %v1020
        %v1072 = vmul.f32 %v855, %v1021
        %v1073 = vmul.f32 %v857, %v1021
        %v1074 = vmul.f32 %v859, %v1022
        %v1075 = vmul.f32 %v861, %v1022
        %v1076 = vmul.f32 %v863, %v1023
        %v1077 = vmul.f32 %v865, %v1023
        %v1078 = vmul.f32 %v867, %v1024
        %v1079 = vmul.f32 %v869, %v1024
        %v1080 = vmul.f32 %v871, %v1025
        %v1081 = vmul.f32 %v873, %v1025
        %v1082 = vmul.f32 %v875, %v1026
        %v1083 = vmul.f32 %v877, %v1026
        %v1084 = vmul.f32 %v879, %v1027
        %v1085 = vmul.f32 %v881, %v1027
        %v1086 = vmul.f32 %v883, %v1028
        %v1087 = vmul.f32 %v885, %v1028
        %v1088 = vmul.f32 %v887, %v1029
        %v1089 = vmul.f32 %v889, %v1029
        %v1090 = vmul.f32 %v891, %v1030
        %v1091 = vmul.f32 %v893, %v1030
        %v1092 = vmul.f32 %v895, %v1031
        %v1093 = vmul.f32 %v897, %v1031
        %v1094 = vmul.f32 %v899, %v1032
        %v1095 = vmul.f32 %v901, %v1032
        %v1096 = vmul.f32 %v903, %v1033
        %v1097 = vmul.f32 %v905, %v1033
        %v1098 = vpack.c.bf16 %v1036, %v1034
        %v1099 = vpack.c.bf16 %v1037, %v1035
        %v1100 = vpack.c.bf16 %v1040, %v1038
        %v1101 = vpack.c.bf16 %v1041, %v1039
        %v1102 = vpack.c.bf16 %v1044, %v1042
        %v1103 = vpack.c.bf16 %v1045, %v1043
        %v1104 = vpack.c.bf16 %v1048, %v1046
        %v1105 = vpack.c.bf16 %v1049, %v1047
        %v1106 = vpack.c.bf16 %v1052, %v1050
        %v1107 = vpack.c.bf16 %v1053, %v1051
        %v1108 = vpack.c.bf16 %v1056, %v1054
        %v1109 = vpack.c.bf16 %v1057, %v1055
        %v1110 = vpack.c.bf16 %v1060, %v1058
        %v1111 = vpack.c.bf16 %v1061, %v1059
        %v1112 = vpack.c.bf16 %v1064, %v1062
        %v1113 = vpack.c.bf16 %v1065, %v1063
        %v1114 = vpack.c.bf16 %v1068, %v1066
        %v1115 = vpack.c.bf16 %v1069, %v1067
        %v1116 = vpack.c.bf16 %v1072, %v1070
        %v1117 = vpack.c.bf16 %v1073, %v1071
        %v1118 = vpack.c.bf16 %v1076, %v1074
        %v1119 = vpack.c.bf16 %v1077, %v1075
        %v1120 = vpack.c.bf16 %v1080, %v1078
        %v1121 = vpack.c.bf16 %v1081, %v1079
        %v1122 = vpack.c.bf16 %v1084, %v1082
        %v1123 = vpack.c.bf16 %v1085, %v1083
        %v1124 = vpack.c.bf16 %v1088, %v1086
        %v1125 = vpack.c.bf16 %v1089, %v1087
        %v1126 = vpack.c.bf16 %v1092, %v1090
        %v1127 = vpack.c.bf16 %v1093, %v1091
        %v1128 = vpack.c.bf16 %v1096, %v1094
        %v1129 = vpack.c.bf16 %v1097, %v1095
        %1130 = vmatprep.subr.bf16.mxu0 %v1113
        %1131 = vmatpush1.bf16.xpose.msra.mxu0 %v1112
        %1132 = vmatprep.subr.bf16.mxu0 %v1111
        %1133 = vmatpush1.bf16.xpose.msra.mxu0 %v1110
        %1134 = vmatprep.subr.bf16.mxu0 %v1109
        %1135 = vmatpush1.bf16.xpose.msra.mxu0 %v1108
        %1136 = vmatprep.subr.bf16.mxu0 %v1107
        %1137 = vmatpush1.bf16.xpose.msra.mxu0 %v1106
        %1138 = vmatprep.subr.bf16.mxu0 %v1105
        %1139 = vmatpush1.bf16.xpose.msra.mxu0 %v1104
        %1140 = vmatprep.subr.bf16.mxu0 %v1103
        %1141 = vmatpush1.bf16.xpose.msra.mxu0 %v1102
        %1142 = vmatprep.subr.bf16.mxu0 %v1101
        %1143 = vmatpush1.bf16.xpose.msra.mxu0 %v1100
        %1144 = vmatprep.subr.bf16.mxu0 %v1099
        %1145 = vmatpush1.bf16.xpose.msra.mxu0 %v1098
        %1146 = vmatprep.subr.bf16.mxu0 %v1129
        %1147 = vmatpush2.bf16.xpose.msra.mxu0 %v1128
        %1148 = vmatprep.subr.bf16.mxu0 %v1127
        %1149 = vmatpush2.bf16.xpose.msra.mxu0 %v1126
        %1150 = vmatprep.subr.bf16.mxu0 %v1125
        %1151 = vmatpush2.bf16.xpose.msra.mxu0 %v1124
        %1152 = vmatprep.subr.bf16.mxu0 %v1123
        %1153 = vmatpush2.bf16.xpose.msra.mxu0 %v1122
        %1154 = vmatprep.subr.bf16.mxu0 %v1121
        %1155 = vmatpush2.bf16.xpose.msra.mxu0 %v1120
        %1156 = vmatprep.subr.bf16.mxu0 %v1119
        %1157 = vmatpush2.bf16.xpose.msra.mxu0 %v1118
        %1158 = vmatprep.subr.bf16.mxu0 %v1117
        %1159 = vmatpush2.bf16.xpose.msra.mxu0 %v1116
        %1160 = vmatprep.subr.bf16.mxu0 %v1115
        %1161 = vmatpush2.bf16.xpose.msra.mxu0 %v1114
        %1162 = vmatprep.mubr.bf16.mxu0 %v334
        %1163 = vmatmul.mubr.bf16.gmra.mxu0 %v333
        %v1164 = vpop.f32.mrf.mxu0
        %v1165 = vadd.f32 0.0, %v1164
        %v1166 = vpop.f32.mrf.mxu0
        %v1167 = vadd.f32 0.0, %v1166
        %v1168 = vpop.f32.mrf.mxu0
        %v1169 = vadd.f32 0.0, %v1168
        %v1170 = vpop.f32.mrf.mxu0
        %v1171 = vadd.f32 0.0, %v1170
        %1172 = vmatprep.mubr.bf16.mxu0 %v336
        %1173 = vmatmul.mubr.bf16.gmra.mxu0 %v335
        %v1174 = vpop.f32.mrf.mxu0
        %v1175 = vadd.f32 0.0, %v1174
        %v1176 = vpop.f32.mrf.mxu0
        %v1177 = vadd.f32 0.0, %v1176
        %v1178 = vpop.f32.mrf.mxu0
        %v1179 = vadd.f32 0.0, %v1178
        %v1180 = vpop.f32.mrf.mxu0
        %v1181 = vadd.f32 0.0, %v1180
        %1182 = vdwg.mxu0
        %v1183 = vstv %s213
        %v1184 = vmul.f32 %v1183, %v1165
        %v1185 = vmul.f32 %v1183, %v1167
        %v1186 = vmul.f32 %v1183, %v1169
        %v1187 = vmul.f32 %v1183, %v1171
        %v1188 = vmul.f32 %v1183, %v1175
        %v1189 = vmul.f32 %v1183, %v1177
        %v1190 = vmul.f32 %v1183, %v1179
        %v1191 = vmul.f32 %v1183, %v1181
        %v1192 = vadd.f32 %v1184, %v214
        %v1193 = vadd.f32 %v1185, %v215
        %v1194 = vadd.f32 %v1186, %v216
        %v1195 = vadd.f32 %v1187, %v217
        %v1196 = vadd.f32 %v1188, %v218
        %v1197 = vadd.f32 %v1189, %v219
        %v1198 = vadd.f32 %v1190, %v220
        %v1199 = vadd.f32 %v1191, %v221
        %1200 = vst [vmem:[%s191] sm:$0xff] %v1192
        %1201 = vst [vmem:[%s191 + $0x8] sm:$0xff] %v1193
        %1202 = vst [vmem:[%s191 + $0x10] sm:$0xff] %v1194
        %1203 = vst [vmem:[%s191 + $0x18] sm:$0xff] %v1195
        %1204 = vst [vmem:[%s191 + $0x20] sm:$0xff] %v1196
        %1205 = vst [vmem:[%s191 + $0x28] sm:$0xff] %v1197
        %1206 = vst [vmem:[%s191 + $0x30] sm:$0xff] %v1198
        %1207 = vst [vmem:[%s191 + $0x38] sm:$0xff] %v1199
        %s1208 = sand.u32 %s116, 1
        %s1209 = scalar_lea.sflag [#allocation4], %s1208
        %s1210 = sand.u32 %s116, 1
        %s1211 = smul.addr %s1210, 64
        %s1212 = scalar_lea.vmem [#allocation3], %s1211
        // Predicated region
        $region37: #{tpu_custom_call.1} parent=35 // pred_check
          %p1213 = pneg %p126
        $region38: #{tpu_custom_call.1} parent=35 // pred_check_branch
          %1215 = sbr.rel (%p1213) target = $region40
        $region39: #{tpu_custom_call.1} parent=35 // pred_region
          %s1217 = ssub.s32 1024, 1024
          %1218 = vsyncadd %s1209, %s1217
          %s1219 = smul.addr %s19, 8
          %s1220 = smul.addr %s1219, 128
          %s1221 = scalar_lea.hbm %s4, %s1220
          %s1222 = sshll.u32 %s1212, 4
          %s1223 = int_to_ptr.vmem [resolvable:$true] %s1222
          %1228 = dma.vmem_to_hbm [thread:$0]  %s1223, 1024, %s1221, %s1209, 256, 256, 16
        $region40: #{tpu_custom_call.1} parent=35 // pred_fallthru
          _
      $region36: #{tpu_custom_call.1} parent=5 // pred_fallthru
        _
      %p1229 = scmp.le.s32.totalorder 2, %s14
      // Predicated region
      $region41: #{tpu_custom_call.1} parent=5 // pred_check
        %p1230 = pneg %p1229
      $region42: #{tpu_custom_call.1} parent=5 // pred_check_branch
        %1232 = sbr.rel (%p1230) target = $region44
      $region43: #{tpu_custom_call.1} parent=5 // pred_region
        %s1233 = ssub.s32 %s14, 2
        // Predicated region
        $region45: #{tpu_custom_call.1} parent=43 // pred_check
          %p1234 = pneg %p132
        $region46: #{tpu_custom_call.1} parent=43 // pred_check_branch
          %1236 = sbr.rel (%p1234) target = $region48
        $region47: #{tpu_custom_call.1} parent=43 // pred_region
          %s1237 = sand.u32 %s117, 1
          %s1238 = scalar_lea.sflag [#allocation4], %s1237
          %s1239 = sand.u32 %s117, 1
          %s1240 = smul.addr %s1239, 64
          %s1241 = scalar_lea.vmem [#allocation3], %s1240
          %1242 = dma.done %s1238, 1024
        $region48: #{tpu_custom_call.1} parent=43 // pred_fallthru
          _
      $region44: #{tpu_custom_call.1} parent=5 // pred_fallthru
        _
    $region6: #{tpu_custom_call.1} parent=1 // loop_footer
      %s18 = sadd.s32 1, %s14
    $region7: #{tpu_custom_call.1} parent=1 // loop_footer_branch
      %13 = sbr.rel target = $region3
    $region8: #{tpu_custom_call.1} parent=1 // loop_exit
      _
    %1243 = vsyncpa [#allocation4], 1
    %s1244 = scalar_lea.sflag [#allocation4], 1
    %1245 = vsyncpa %s1244, 1

</llo_original>
